<compile_context>
chip_gen: v5e
topology: v5e:2x2
jax: 0.10.0
libtpu: 0.0.40
codegen_flags: <defaults>
</compile_context>

<pallas_src>
import numpy as np
import jax
import jax.numpy as jnp
from jax.experimental import pallas as pl
from jax.experimental.pallas import tpu as pltpu

POOL_SIZES = (1, 2, 3, 6)
BN_EPS = 1e-5
PPAD = 64              # pad total pooled rows (50) up to a multiple of this
HW_TILE_CAP = 2048     # max spatial tile width (lanes)
X_TILE_BUDGET = 4 << 20  # target bytes for one x tile (per buffer)


# ----------------------------------------------------------------------------
# Structural (data-independent) matrices: adaptive avg-pool and bilinear
# upsample (align_corners=True) expressed as linear maps over flattened H*W.
# ----------------------------------------------------------------------------
def _pool_matrix_1d(H, s):
    P = np.zeros((s, H), np.float32)
    for i in range(s):
        start = (i * H) // s
        end = ((i + 1) * H + s - 1) // s  # ceil
        P[i, start:end] = 1.0 / (end - start)
    return P


def _upsample_matrix_1d(s, H):
    # bilinear, align_corners=True, from length s to length H
    if s == 1:
        return np.ones((H, 1), np.float32)
    U = np.zeros((H, s), np.float32)
    for h in range(H):
        src = h * (s - 1) / (H - 1)
        lo = min(int(np.floor(src)), s - 2)
        frac = src - lo
        U[h, lo] += 1.0 - frac
        U[h, lo + 1] += frac
    return U


def _pool_matrix_2d(H, W, s):
    return np.kron(_pool_matrix_1d(H, s), _pool_matrix_1d(W, s))      # (s*s, H*W)


def _upsample_matrix_2d(s, H, W):
    return np.kron(_upsample_matrix_1d(s, H), _upsample_matrix_1d(s, W))  # (H*W, s*s)


# ----------------------------------------------------------------------------
# Pallas kernels (channel-major: channels on sublanes, H*W on lanes)
# ----------------------------------------------------------------------------
def ppm_pool_kernel(x_ref, pt_ref, wcatT_ref, bcatT_ref, mT_ref, wofT_ref,
                    g_ref, acc_ref):
    t = pl.program_id(1)

    @pl.when(t == 0)
    def _():
        acc_ref[...] = jnp.zeros_like(acc_ref)

    # partial adaptive avg-pool over this HW tile: (C, tHW) @ (tHW, Pp)
    acc_ref[...] += jnp.dot(x_ref[0], pt_ref[...],
                            preferred_element_type=jnp.float32)

    @pl.when(t == pl.num_programs(1) - 1)
    def _():
        # branch 1x1 conv (+ folded BN) + ReLU, then 0/1 mask that keeps each
        # branch's pooled columns only in its own channel block.
        a = jnp.dot(wcatT_ref[...], acc_ref[...].astype(jnp.bfloat16),
                    preferred_element_type=jnp.float32) + bcatT_ref[...]
        a = jnp.maximum(a, 0.0) * mT_ref[...]
        # fold the "feature" half of the output 1x1 conv before upsampling:
        # Wof^T @ (a @ U)  ==  (Wof^T @ a) @ U   -> emit tiny (Cout, Pp) g.
        g = jnp.dot(wofT_ref[...], a.astype(jnp.bfloat16),
                    preferred_element_type=jnp.float32)
        g_ref[0] = g.astype(g_ref.dtype)


def ppm_out_kernel(g_ref, ut_ref, x_ref, woxT_ref, boT_ref, o_ref):
    # out = ReLU( Wox^T @ x  +  g @ U  +  b_out )   for this HW tile
    out = (jnp.dot(woxT_ref[...], x_ref[0], preferred_element_type=jnp.float32)
           + jnp.dot(g_ref[0], ut_ref[...], preferred_element_type=jnp.float32)
           + boT_ref[...])
    o_ref[0] = jnp.maximum(out, 0.0).astype(o_ref.dtype)


# ----------------------------------------------------------------------------
# Wrapper helpers
# ----------------------------------------------------------------------------
def _const_spec(shape, index_map):
    # constant-index operand: a single VMEM buffer is enough (no double buffer)
    return pl.BlockSpec(shape, index_map, pipeline_mode=pl.Buffered(1))


def _pick_hw_tile(HW, C, cap=HW_TILE_CAP, budget=X_TILE_BUDGET):
    # keep a single (C, tHW) bf16 x-tile within `budget` bytes
    max_lanes = max(128, ((budget // max(2 * C, 1)) // 128) * 128)
    cap = min(cap, max_lanes)
    best = None
    c = 128
    while c <= min(HW, cap):
        if HW % c == 0:
            best = c
        c += 128
    return best if best is not None else HW   # full-extent block is always legal


def _vmem_limit(blocks, floor=8 << 20, cap=48 << 20):
    # blocks: list of (block_shape, dtype, buffer_count)
    total = sum(int(np.prod(s)) * np.dtype(d).itemsize * b for s, d, b in blocks)
    return int(min(max(2 * total + (4 << 20), floor), cap))


def ppm_forward(x_nchw, packed):
    (Pt, UtT, MT, WcatT, bcatT, WofT, WoxT, boT) = packed
    N, C, H, W = x_nchw.shape
    HW = H * W
    Pp = Pt.shape[1]
    C4 = WcatT.shape[0]
    Cout = WoxT.shape[0]

    # channel-major, lane-dense layout: (N, C, HW) is a free view of NCHW
    x_cm = x_nchw.reshape(N, C, HW).astype(jnp.bfloat16)

    tHW = _pick_hw_tile(HW, C)
    T = HW // tHW if HW % tHW == 0 else 1

    # ---- phase 1: pool -> branch 1x1 conv + BN + ReLU -> fold Wof -> (Cout, Pp)
    p1_vmem = _vmem_limit([
        ((1, C, tHW), jnp.bfloat16, 2), ((tHW, Pp), jnp.bfloat16, 2),
        ((C4, C), jnp.bfloat16, 1), ((C4, 1), jnp.float32, 1),
        ((C4, Pp), jnp.float32, 1), ((Cout, C4), jnp.bfloat16, 1),
        ((1, Cout, Pp), jnp.bfloat16, 2), ((C, Pp), jnp.float32, 1),
    ])
    g = pl.pallas_call(
        ppm_pool_kernel,
        out_shape=jax.ShapeDtypeStruct((N, Cout, Pp), jnp.bfloat16),
        grid=(N, T),
        in_specs=[
            pl.BlockSpec((1, C, tHW), lambda n, t: (n, 0, t)),
            pl.BlockSpec((tHW, Pp), lambda n, t: (t, 0)),
            _const_spec((C4, C), lambda n, t: (0, 0)),
            _const_spec((C4, 1), lambda n, t: (0, 0)),
            _const_spec((C4, Pp), lambda n, t: (0, 0)),
            _const_spec((Cout, C4), lambda n, t: (0, 0)),
        ],
        out_specs=pl.BlockSpec((1, Cout, Pp), lambda n, t: (n, 0, 0)),
        scratch_shapes=[pltpu.VMEM((C, Pp), jnp.float32)],
        compiler_params=pltpu.CompilerParams(
            dimension_semantics=("parallel", "arbitrary"),
            vmem_limit_bytes=p1_vmem),
    )(x_cm, Pt, WcatT, bcatT, MT, WofT)

    # ---- phase 2: x-path 1x1 conv + upsampled folded features + BN + ReLU ----
    p2_vmem = _vmem_limit([
        ((1, Cout, Pp), jnp.bfloat16, 2), ((Pp, tHW), jnp.bfloat16, 2),
        ((1, C, tHW), jnp.bfloat16, 2), ((Cout, C), jnp.bfloat16, 1),
        ((Cout, 1), jnp.float32, 1), ((1, Cout, tHW), jnp.float32, 2),
    ])
    out_cm = pl.pallas_call(
        ppm_out_kernel,
        out_shape=jax.ShapeDtypeStruct((N, Cout, HW), jnp.float32),
        grid=(N, T),
        in_specs=[
            pl.BlockSpec((1, Cout, Pp), lambda n, t: (n, 0, 0)),
            pl.BlockSpec((Pp, tHW), lambda n, t: (0, t)),
            pl.BlockSpec((1, C, tHW), lambda n, t: (n, 0, t)),
            _const_spec((Cout, C), lambda n, t: (0, 0)),
            _const_spec((Cout, 1), lambda n, t: (0, 0)),
        ],
        out_specs=pl.BlockSpec((1, Cout, tHW), lambda n, t: (n, 0, t)),
        compiler_params=pltpu.CompilerParams(
            dimension_semantics=("parallel", "parallel"),
            vmem_limit_bytes=p2_vmem),
    )(g, UtT, x_cm, WoxT, boT)

    return out_cm.reshape(N, Cout, H, W)   # free reshape (NCHW already)


# ----------------------------------------------------------------------------
# Deterministic parameter construction (ConvBNReLU x5, BN folded in eval mode)
# ----------------------------------------------------------------------------
def _fold_bn(W, b, gamma, beta, mean, var, eps=BN_EPS):
    scale = gamma / jnp.sqrt(var + eps)
    return W * scale[None, :], (b - mean) * scale + beta


def init_ppm(key, in_channels, out_channels, H, W, ratio=4):
    Ci = in_channels // ratio
    keys = jax.random.split(key, 30)
    kit = iter(keys)

    def conv_bn(cin, cout):
        Wc = jax.random.normal(next(kit), (cin, cout), jnp.float32) * 0.1
        bc = jax.random.normal(next(kit), (cout,), jnp.float32) * 0.05
        gamma = 1.0 + 0.1 * jax.random.normal(next(kit), (cout,), jnp.float32)
        beta = 0.05 * jax.random.normal(next(kit), (cout,), jnp.float32)
        mean = 0.05 * jax.random.normal(next(kit), (cout,), jnp.float32)
        var = 1.0 + 0.1 * jax.random.uniform(next(kit), (cout,), jnp.float32)
        return _fold_bn(Wc, bc, gamma, beta, mean, var)

    branch = [conv_bn(in_channels, Ci) for _ in range(4)]             # conv1..conv4
    Wo, bo = conv_bn(in_channels + 4 * Ci, out_channels)              # self.out

    # structural matrices, padded from Ptot=50 to a multiple of 64
    P2d = {s: _pool_matrix_2d(H, W, s) for s in POOL_SIZES}
    U2d = {s: _upsample_matrix_2d(s, H, W) for s in POOL_SIZES}
    Ptot = sum(s * s for s in POOL_SIZES)
    Pp = max(PPAD, ((Ptot + PPAD - 1) // PPAD) * PPAD)
    HW = H * W

    P_all = np.zeros((Pp, HW), np.float32)
    U_all = np.zeros((HW, Pp), np.float32)
    M = np.zeros((Pp, 4 * Ci), np.float32)
    roff = 0
    for i, s in enumerate(POOL_SIZES):
        P_all[roff:roff + s * s, :] = P2d[s]
        U_all[:, roff:roff + s * s] = U2d[s]
        M[roff:roff + s * s, i * Ci:(i + 1) * Ci] = 1.0
        roff += s * s

    Wcat = jnp.concatenate([branch[i][0] for i in range(4)], axis=1)  # (Cin, 4Ci)
    bcat = jnp.concatenate([branch[i][1] for i in range(4)])          # (4Ci,)
    Wox = Wo[:in_channels, :]                                         # x part of concat
    Wof = Wo[in_channels:, :]                                         # feat part

    packed = (
        jnp.asarray(P_all.T, jnp.bfloat16),       # Pt    (HW, Pp)
        jnp.asarray(U_all.T, jnp.bfloat16),       # UtT   (Pp, HW)
        jnp.asarray(M.T, jnp.float32),            # MT    (4Ci, Pp)
        jnp.asarray(Wcat.T, jnp.bfloat16),        # WcatT (4Ci, Cin)
        jnp.asarray(bcat, jnp.float32)[:, None],  # bcatT (4Ci, 1)
        jnp.asarray(Wof.T, jnp.bfloat16),         # WofT  (Cout, 4Ci)
        jnp.asarray(Wox.T, jnp.bfloat16),         # WoxT  (Cout, Cin)
        jnp.asarray(bo, jnp.float32)[:, None],    # boT   (Cout, 1)
    )
    ref_parts = (branch, (Wo, bo), P2d, U2d)
    return packed, ref_parts


# ----------------------------------------------------------------------------
# Pure-JAX f32 reference (mirrors the PyTorch forward, per-branch, explicit concat)
# ----------------------------------------------------------------------------
def ppm_reference(x_nchw, ref_parts):
    branch, (Wo, bo), P2d, U2d = ref_parts
    N, C, H, W = x_nchw.shape
    x_flat = jnp.transpose(x_nchw, (0, 2, 3, 1)).reshape(N, H * W, C)
    feats = [x_flat]
    for i, s in enumerate(POOL_SIZES):
        Wb, bb = branch[i]
        pooled = jnp.einsum('ph,nhc->npc', jnp.asarray(P2d[s]), x_flat)
        act = jnp.maximum(pooled @ Wb + bb, 0.0)
        feats.append(jnp.einsum('hp,npc->nhc', jnp.asarray(U2d[s]), act))
    cat = jnp.concatenate(feats, axis=-1)
    out = jnp.maximum(cat @ Wo + bo, 0.0)
    return jnp.transpose(out.reshape(N, H, W, -1), (0, 3, 1, 2))


if __name__ == "__main__":
    N, Cin, H, W = 2, 16, 16, 16
    Cout = 32

    key = jax.random.PRNGKey(0)
    kx, kp = jax.random.split(key)
    x = jax.random.normal(kx, (N, Cin, H, W), jnp.float32)

    packed, ref_parts = init_ppm(kp, Cin, Cout, H, W, ratio=4)

    out = jax.block_until_ready(ppm_forward(x, packed))
    ref = jax.block_until_ready(ppm_reference(x, ref_parts))

    assert out.shape == (N, Cout, H, W), out.shape
    # bf16 operands / f32 accumulation vs f32 reference -> relaxed tolerance
    np.testing.assert_allclose(np.asarray(out), np.asarray(ref),
                               rtol=4e-2, atol=4e-2)
    print("KERNEL_OK")
</pallas_src>

<mosaic_0001>
module attributes {stable_mosaic.version = 11 : i64} {
  func.func @ppm_pool_kernel(%arg0: i32, %arg1: i32, %arg2: memref<1x16x256xbf16, #tpu.memory_space<vmem>>, %arg3: memref<256x64xbf16, #tpu.memory_space<vmem>>, %arg4: memref<16x16xbf16, #tpu.memory_space<vmem>>, %arg5: memref<16x1xf32, #tpu.memory_space<vmem>>, %arg6: memref<16x64xf32, #tpu.memory_space<vmem>>, %arg7: memref<32x16xbf16, #tpu.memory_space<vmem>>, %arg8: memref<1x32x64xbf16, #tpu.memory_space<vmem>>, %arg9: memref<16x64xf32, #tpu.memory_space<vmem>>) attributes {dimension_semantics = [#tpu.dimension_semantics<parallel>, #tpu.dimension_semantics<arbitrary>], iteration_bounds = array<i64: 2, 1>, scalar_prefetch = 0 : i64, scratch_operands = 1 : i64, tpu.core_type = #tpu.core_type<tc>, window_params = [{transform_indices = @transform_0, window_bounds = array<i64: 1, 16, 256>}, {transform_indices = @transform_1, window_bounds = array<i64: 256, 64>}, {pipeline_mode = #tpu.pipeline_mode<synchronous>, transform_indices = @transform_2, window_bounds = array<i64: 16, 16>}, {pipeline_mode = #tpu.pipeline_mode<synchronous>, transform_indices = @transform_3, window_bounds = array<i64: 16, 1>}, {pipeline_mode = #tpu.pipeline_mode<synchronous>, transform_indices = @transform_4, window_bounds = array<i64: 16, 64>}, {pipeline_mode = #tpu.pipeline_mode<synchronous>, transform_indices = @transform_5, window_bounds = array<i64: 32, 16>}, {transform_indices = @transform_6, window_bounds = array<i64: 1, 32, 64>}]} {
    %c0_i32 = arith.constant 0 : i32
    %0 = arith.cmpi eq, %arg1, %c0_i32 : i32
    %1 = arith.extui %0 : i1 to i32
    %c0_i32_0 = arith.constant 0 : i32
    %2 = arith.cmpi ne, %1, %c0_i32_0 : i32
    scf.if %2 {
      %cst_11 = arith.constant 0.000000e+00 : f32
      %13 = vector.broadcast %cst_11 : f32 to vector<16x64xf32>
      %c0_12 = arith.constant 0 : index
      %c0_13 = arith.constant 0 : index
      %14 = vector.load %arg9[%c0_12, %c0_13] : memref<16x64xf32, #tpu.memory_space<vmem>>, vector<16x64xf32>
      tpu.vector_store %arg9[%c0_12, %c0_13], %13 {strides = array<i32>} : memref<16x64xf32, #tpu.memory_space<vmem>>, vector<16x64xf32>,
    } else {
    }
    %c0 = arith.constant 0 : index
    %c0_1 = arith.constant 0 : index
    %3 = vector.load %arg9[%c0, %c0_1] : memref<16x64xf32, #tpu.memory_space<vmem>>, vector<16x64xf32>
    %c0_2 = arith.constant 0 : index
    %c0_3 = arith.constant 0 : index
    %c0_4 = arith.constant 0 : index
    %4 = vector.load %arg2[%c0_2, %c0_3, %c0_4] : memref<1x16x256xbf16, #tpu.memory_space<vmem>>, vector<1x16x256xbf16>
    %5 = vector.shape_cast %4 : vector<1x16x256xbf16> to vector<16x256xbf16>
    %c0_5 = arith.constant 0 : index
    %c0_6 = arith.constant 0 : index
    %6 = vector.load %arg3[%c0_5, %c0_6] : memref<256x64xbf16, #tpu.memory_space<vmem>>, vector<256x64xbf16>
    %cst = arith.constant dense<0.000000e+00> : vector<16x64xf32>
    %7 = tpu.matmul %5, %6, %cst {dimension_numbers = #tpu.dot_dimension_numbers<[1], [0], [0], [1], [0, 0, 1, 1], [], []>} : vector<16x256xbf16>, vector<256x64xbf16>, vector<16x64xf32> -> vector<16x64xf32>
    %8 = arith.addf %3, %7 : vector<16x64xf32>
    %c0_7 = arith.constant 0 : index
    %c0_8 = arith.constant 0 : index
    %9 = vector.load %arg9[%c0_7, %c0_8] : memref<16x64xf32, #tpu.memory_space<vmem>>, vector<16x64xf32>
    tpu.vector_store %arg9[%c0_7, %c0_8], %8 {strides = array<i32>} : memref<16x64xf32, #tpu.memory_space<vmem>>, vector<16x64xf32>,
    %c0_i32_9 = arith.constant 0 : i32
    %10 = arith.cmpi eq, %arg1, %c0_i32_9 : i32
    %11 = arith.extui %10 : i1 to i32
    %c0_i32_10 = arith.constant 0 : i32
    %12 = arith.cmpi ne, %11, %c0_i32_10 : i32
    scf.if %12 {
      %c0_11 = arith.constant 0 : index
      %c0_12 = arith.constant 0 : index
      %13 = vector.load %arg4[%c0_11, %c0_12] : memref<16x16xbf16, #tpu.memory_space<vmem>>, vector<16x16xbf16>
      %c0_13 = arith.constant 0 : index
      %c0_14 = arith.constant 0 : index
      %14 = vector.load %arg9[%c0_13, %c0_14] : memref<16x64xf32, #tpu.memory_space<vmem>>, vector<16x64xf32>
      %15 = arith.truncf %14 : vector<16x64xf32> to vector<16x64xbf16>
      %cst_15 = arith.constant dense<0.000000e+00> : vector<16x64xf32>
      %16 = tpu.matmul %13, %15, %cst_15 {dimension_numbers = #tpu.dot_dimension_numbers<[1], [0], [0], [1], [0, 0, 1, 1], [], []>} : vector<16x16xbf16>, vector<16x64xbf16>, vector<16x64xf32> -> vector<16x64xf32>
      %c0_16 = arith.constant 0 : index
      %c0_17 = arith.constant 0 : index
      %17 = vector.load %arg5[%c0_16, %c0_17] : memref<16x1xf32, #tpu.memory_space<vmem>>, vector<16x1xf32>
      %18 = vector.broadcast %17 : vector<16x1xf32> to vector<16x64xf32>
      %19 = arith.addf %16, %18 : vector<16x64xf32>
      %cst_18 = arith.constant 0.000000e+00 : f32
      %20 = vector.broadcast %cst_18 : f32 to vector<16x64xf32>
      %21 = arith.maximumf %19, %20 : vector<16x64xf32>
      %c0_19 = arith.constant 0 : index
      %c0_20 = arith.constant 0 : index
      %22 = vector.load %arg6[%c0_19, %c0_20] : memref<16x64xf32, #tpu.memory_space<vmem>>, vector<16x64xf32>
      %23 = arith.mulf %21, %22 : vector<16x64xf32>
      %c0_21 = arith.constant 0 : index
      %c0_22 = arith.constant 0 : index
      %24 = vector.load %arg7[%c0_21, %c0_22] : memref<32x16xbf16, #tpu.memory_space<vmem>>, vector<32x16xbf16>
      %25 = arith.truncf %23 : vector<16x64xf32> to vector<16x64xbf16>
      %cst_23 = arith.constant dense<0.000000e+00> : vector<32x64xf32>
      %26 = tpu.matmul %24, %25, %cst_23 {dimension_numbers = #tpu.dot_dimension_numbers<[1], [0], [0], [1], [0, 0, 1, 1], [], []>} : vector<32x16xbf16>, vector<16x64xbf16>, vector<32x64xf32> -> vector<32x64xf32>
      %27 = arith.truncf %26 : vector<32x64xf32> to vector<32x64xbf16>
      %c0_24 = arith.constant 0 : index
      %c0_25 = arith.constant 0 : index
      %c0_26 = arith.constant 0 : index
      %28 = vector.load %arg8[%c0_24, %c0_25, %c0_26] : memref<1x32x64xbf16, #tpu.memory_space<vmem>>, vector<1x32x64xbf16>
      %29 = vector.shape_cast %28 : vector<1x32x64xbf16> to vector<32x64xbf16>
      %30 = vector.shape_cast %27 : vector<32x64xbf16> to vector<1x32x64xbf16>
      tpu.vector_store %arg8[%c0_24, %c0_25, %c0_26], %30 {strides = array<i32>} : memref<1x32x64xbf16, #tpu.memory_space<vmem>>, vector<1x32x64xbf16>,
    } else {
    }
    return
  }
  func.func @transform_0(%arg0: i32, %arg1: i32) -> (i32, i32, i32) {
    %c0_i32 = arith.constant 0 : i32
    %c0_i32_0 = arith.constant 0 : i32
    return %arg0, %c0_i32, %arg1 : i32, i32, i32
  }
  func.func @transform_1(%arg0: i32, %arg1: i32) -> (i32, i32) {
    %c0_i32 = arith.constant 0 : i32
    %c0_i32_0 = arith.constant 0 : i32
    return %arg1, %c0_i32 : i32, i32
  }
  func.func @transform_2(%arg0: i32, %arg1: i32) -> (i32, i32) {
    %c0_i32 = arith.constant 0 : i32
    %c0_i32_0 = arith.constant 0 : i32
    %c0_i32_1 = arith.constant 0 : i32
    return %c0_i32, %c0_i32_0 : i32, i32
  }
  func.func @transform_3(%arg0: i32, %arg1: i32) -> (i32, i32) {
    %c0_i32 = arith.constant 0 : i32
    %c0_i32_0 = arith.constant 0 : i32
    %c0_i32_1 = arith.constant 0 : i32
    return %c0_i32, %c0_i32_0 : i32, i32
  }
  func.func @transform_4(%arg0: i32, %arg1: i32) -> (i32, i32) {
    %c0_i32 = arith.constant 0 : i32
    %c0_i32_0 = arith.constant 0 : i32
    %c0_i32_1 = arith.constant 0 : i32
    return %c0_i32, %c0_i32_0 : i32, i32
  }
  func.func @transform_5(%arg0: i32, %arg1: i32) -> (i32, i32) {
    %c0_i32 = arith.constant 0 : i32
    %c0_i32_0 = arith.constant 0 : i32
    %c0_i32_1 = arith.constant 0 : i32
    return %c0_i32, %c0_i32_0 : i32, i32
  }
  func.func @transform_6(%arg0: i32, %arg1: i32) -> (i32, i32, i32) {
    %c0_i32 = arith.constant 0 : i32
    %c0_i32_0 = arith.constant 0 : i32
    %c0_i32_1 = arith.constant 0 : i32
    return %arg0, %c0_i32, %c0_i32_0 : i32, i32, i32
  }
}

</mosaic_0001>

<llo_original>
// kernel: tpu_custom_call.1
$region0: #{tpu_custom_call.1}
  #allocation0 [shape = 'u32[]', space=smem, size = 0x4, offset = 0x4, fixed_abs, tag = 'smem constant byte address 0x4 - core index']
  #allocation1 [shape = 'u32[72,128]{1,0:T(1,128)}', space=vmem, size = 0x9000, scoped, tag = 'internal scratch']
  #allocation2 [shape = 'f32[16,64]{1,0:T(8,128)}', space=vmem, size = 0x2000, scoped, tag = 'scratch operand']
  %s0 = inlined_call_operand.vmem [shape: bf16[2,16,256], index: 0, kind: input, shape index: {}]
  %s1 = inlined_call_operand.vmem [shape: bf16[256,64], index: 1, kind: input, shape index: {}]
  %s2 = inlined_call_operand.vmem [shape: bf16[16,16], index: 2, kind: input, shape index: {}]
  %s3 = inlined_call_operand.vmem [shape: f32[16,1], index: 3, kind: input, shape index: {}]
  %s4 = inlined_call_operand.vmem [shape: f32[16,64], index: 4, kind: input, shape index: {}]
  %s5 = inlined_call_operand.vmem [shape: bf16[32,16], index: 5, kind: input, shape index: {}]
  %s6 = inlined_call_operand.hbm [shape: bf16[2,32,64], index: 6, kind: output, shape index: {}]
  %s7 = sld [smem:[#allocation0]]
  $region65: #{tpu_custom_call.1} parent=0
    _
  %s9 = ssub.s32 1, %s7
  %s10 = scalar_select 0, %s9, %s7
  $region1: #{tpu_custom_call.1} parent=0
    #allocation3 [shape = 'u8[16384]{0}', space=vmem, size = 0x4000, scoped, tag = 'output window, operand 0']
    #allocation4 [shape = 's32[2]{0}', space=sflag, size = 0x8, scoped, tag = 'scoped memory for tpu_custom_call.1']
    %11 = vsyncpa [#allocation4], 0
    %s12 = scalar_lea.sflag [#allocation4], 1
    %13 = vsyncpa %s12, 0
    loop: start=0, step=1, limit=4
    $region2: #{tpu_custom_call.1} parent=1 // loop_pre_header
      _
    $region3: #{tpu_custom_call.1} parent=1 // loop_header
      %s15 = sphi 0, %s19
      %p16 = scmp.ge.s32.totalorder %s15, 4
      %s22 = sphi 0, %s34
      %s23 = sphi 0, %s30
      %s24 = sphi 0, %s22
      %s25 = sphi 0, %s23
      %s26 = sphi 0, %s24
      %s27 = sphi 0, %s25
      %s39 = sphi 0, %s41
      %s42 = sphi 0, %s39
      %s43 = sphi 0, %s42
      %s59 = sphi 0, %s43
      %s65 = sphi 0, %s67
      %s68 = sphi 0, %s65
      %s69 = sphi 0, %s68
      %s85 = sphi 0, %s69
      %s89 = sphi 0, %s89
      %s91 = sphi 0, %s89
      %s92 = sphi 0, %s91
      %s106 = sphi 0, %s92
      %s110 = sphi 0, %s110
      %s112 = sphi 0, %s110
      %s113 = sphi 0, %s112
      %s127 = sphi 0, %s113
      %s131 = sphi 0, %s131
      %s133 = sphi 0, %s131
      %s134 = sphi 0, %s133
      %s148 = sphi 0, %s134
      %s152 = sphi 0, %s152
      %s154 = sphi 0, %s152
      %s155 = sphi 0, %s154
      %s169 = sphi 0, %s155
      %s175 = sphi 0, %s177
      %s178 = sphi 0, %s175
      %s179 = sphi 0, %s178
      %s195 = sphi 0, %s179
    $region4: #{tpu_custom_call.1} parent=1 // loop_header_branch
      %18 = sbr.rel (%p16) target = $region8
    $region5: #{tpu_custom_call.1} parent=1 // loop_body
      %s20 = ssub.s32 %s15, 1
      %s21 = ssub.s32 %s15, 2
      %s28 = sadd.s32 1, %s23
      %p29 = scmp.ge.s32.totalorder %s28, 1
      %s30 = scalar_select %p29, 0, %s28
      %s31 = sadd.s32 1, %s22
      %s32 = scalar_select %p29, %s31, %s22
      %p33 = scmp.ge.s32.totalorder %s32, 2
      %s34 = scalar_select %p33, 0, %s32
      %s35 = ssub.s32 %s22, %s34
      %s36 = ssub.s32 %s23, %s30
      %s37 = sor.u32 %s35, %s36
      %p38 = scmp.eq.s32.totalorder %s37, 0
      %s40 = sadd.s32 %s39, 1
      %s41 = scalar_select %p38, %s39, %s40
      %p44 = pneg %p38
      %p45 = scmp.eq.s32.totalorder %s15, 1
      %p46 = por %p44, %p45
      %p47 = scmp.ne.s32.totalorder %s39, %s42
      %p48 = scmp.eq.s32.totalorder %s15, 0
      %p49 = por %p47, %p48
      %p50 = scmp.ne.s32.totalorder %s39, %s42
      %p51 = scmp.eq.s32.totalorder %s20, 1
      %p52 = por %p50, %p51
      %p53 = scmp.ne.s32.totalorder %s42, %s43
      %p54 = scmp.eq.s32.totalorder %s20, 0
      %p55 = por %p53, %p54
      %p56 = scmp.ne.s32.totalorder %s42, %s43
      %p57 = scmp.eq.s32.totalorder %s21, 1
      %p58 = por %p56, %p57
      %p60 = scmp.ne.s32.totalorder %s43, %s59
      %p61 = scmp.eq.s32.totalorder %s21, 0
      %p62 = por %p60, %p61
      %s63 = ssub.s32 %s23, %s30
      %p64 = scmp.eq.s32.totalorder %s63, 0
      %s66 = sadd.s32 %s65, 1
      %s67 = scalar_select %p64, %s65, %s66
      %p70 = pneg %p64
      %p71 = scmp.eq.s32.totalorder %s15, 1
      %p72 = por %p70, %p71
      %p73 = scmp.ne.s32.totalorder %s65, %s68
      %p74 = scmp.eq.s32.totalorder %s15, 0
      %p75 = por %p73, %p74
      %p76 = scmp.ne.s32.totalorder %s65, %s68
      %p77 = scmp.eq.s32.totalorder %s20, 1
      %p78 = por %p76, %p77
      %p79 = scmp.ne.s32.totalorder %s68, %s69
      %p80 = scmp.eq.s32.totalorder %s20, 0
      %p81 = por %p79, %p80
      %p82 = scmp.ne.s32.totalorder %s68, %s69
      %p83 = scmp.eq.s32.totalorder %s21, 1
      %p84 = por %p82, %p83
      %p86 = scmp.ne.s32.totalorder %s69, %s85
      %p87 = scmp.eq.s32.totalorder %s21, 0
      %p88 = por %p86, %p87
      %s90 = sadd.s32 %s89, 1
      %p93 = scmp.eq.s32.totalorder %s15, 1
      %p94 = scmp.ne.s32.totalorder %s89, %s91
      %p95 = scmp.eq.s32.totalorder %s15, 0
      %p96 = por %p94, %p95
      %p97 = scmp.ne.s32.totalorder %s89, %s91
      %p98 = scmp.eq.s32.totalorder %s20, 1
      %p99 = por %p97, %p98
      %p100 = scmp.ne.s32.totalorder %s91, %s92
      %p101 = scmp.eq.s32.totalorder %s20, 0
      %p102 = por %p100, %p101
      %p103 = scmp.ne.s32.totalorder %s91, %s92
      %p104 = scmp.eq.s32.totalorder %s21, 1
      %p105 = por %p103, %p104
      %p107 = scmp.ne.s32.totalorder %s92, %s106
      %p108 = scmp.eq.s32.totalorder %s21, 0
      %p109 = por %p107, %p108
      %s111 = sadd.s32 %s110, 1
      %p114 = scmp.eq.s32.totalorder %s15, 1
      %p115 = scmp.ne.s32.totalorder %s110, %s112
      %p116 = scmp.eq.s32.totalorder %s15, 0
      %p117 = por %p115, %p116
      %p118 = scmp.ne.s32.totalorder %s110, %s112
      %p119 = scmp.eq.s32.totalorder %s20, 1
      %p120 = por %p118, %p119
      %p121 = scmp.ne.s32.totalorder %s112, %s113
      %p122 = scmp.eq.s32.totalorder %s20, 0
      %p123 = por %p121, %p122
      %p124 = scmp.ne.s32.totalorder %s112, %s113
      %p125 = scmp.eq.s32.totalorder %s21, 1
      %p126 = por %p124, %p125
      %p128 = scmp.ne.s32.totalorder %s113, %s127
      %p129 = scmp.eq.s32.totalorder %s21, 0
      %p130 = por %p128, %p129
      %s132 = sadd.s32 %s131, 1
      %p135 = scmp.eq.s32.totalorder %s15, 1
      %p136 = scmp.ne.s32.totalorder %s131, %s133
      %p137 = scmp.eq.s32.totalorder %s15, 0
      %p138 = por %p136, %p137
      %p139 = scmp.ne.s32.totalorder %s131, %s133
      %p140 = scmp.eq.s32.totalorder %s20, 1
      %p141 = por %p139, %p140
      %p142 = scmp.ne.s32.totalorder %s133, %s134
      %p143 = scmp.eq.s32.totalorder %s20, 0
      %p144 = por %p142, %p143
      %p145 = scmp.ne.s32.totalorder %s133, %s134
      %p146 = scmp.eq.s32.totalorder %s21, 1
      %p147 = por %p145, %p146
      %p149 = scmp.ne.s32.totalorder %s134, %s148
      %p150 = scmp.eq.s32.totalorder %s21, 0
      %p151 = por %p149, %p150
      %s153 = sadd.s32 %s152, 1
      %p156 = scmp.eq.s32.totalorder %s15, 1
      %p157 = scmp.ne.s32.totalorder %s152, %s154
      %p158 = scmp.eq.s32.totalorder %s15, 0
      %p159 = por %p157, %p158
      %p160 = scmp.ne.s32.totalorder %s152, %s154
      %p161 = scmp.eq.s32.totalorder %s20, 1
      %p162 = por %p160, %p161
      %p163 = scmp.ne.s32.totalorder %s154, %s155
      %p164 = scmp.eq.s32.totalorder %s20, 0
      %p165 = por %p163, %p164
      %p166 = scmp.ne.s32.totalorder %s154, %s155
      %p167 = scmp.eq.s32.totalorder %s21, 1
      %p168 = por %p166, %p167
      %p170 = scmp.ne.s32.totalorder %s155, %s169
      %p171 = scmp.eq.s32.totalorder %s21, 0
      %p172 = por %p170, %p171
      %s173 = ssub.s32 %s22, %s34
      %p174 = scmp.eq.s32.totalorder %s173, 0
      %s176 = sadd.s32 %s175, 1
      %s177 = scalar_select %p174, %s175, %s176
      %p180 = pneg %p174
      %p181 = scmp.eq.s32.totalorder %s15, 1
      %p182 = por %p180, %p181
      %p183 = scmp.ne.s32.totalorder %s175, %s178
      %p184 = scmp.eq.s32.totalorder %s15, 0
      %p185 = por %p183, %p184
      %p186 = scmp.ne.s32.totalorder %s175, %s178
      %p187 = scmp.eq.s32.totalorder %s20, 1
      %p188 = por %p186, %p187
      %p189 = scmp.ne.s32.totalorder %s178, %s179
      %p190 = scmp.eq.s32.totalorder %s20, 0
      %p191 = por %p189, %p190
      %p192 = scmp.ne.s32.totalorder %s178, %s179
      %p193 = scmp.eq.s32.totalorder %s21, 1
      %p194 = por %p192, %p193
      %p196 = scmp.ne.s32.totalorder %s179, %s195
      %p197 = scmp.eq.s32.totalorder %s21, 0
      %p198 = por %p196, %p197
      %p199 = scmp.le.s32.totalorder 1, %s15
      %p200 = scmp.lt.s32.totalorder %s15, 3
      %p201 = pnand %p199, %p200
      %p202 = pneg %p201
      // Predicated region
      $region9: #{tpu_custom_call.1} parent=5 // pred_check
        _
      $region10: #{tpu_custom_call.1} parent=5 // pred_check_branch
        %204 = sbr.rel (%p201) target = $region12
      $region11: #{tpu_custom_call.1} parent=5 // pred_region
        %s205 = ssub.s32 %s15, 1
        // Predicated region
        $region13: #{tpu_custom_call.1} parent=11 // pred_check
          %p206 = pneg %p81
        $region14: #{tpu_custom_call.1} parent=11 // pred_check_branch
          %208 = sbr.rel (%p206) target = $region16
        $region15: #{tpu_custom_call.1} parent=11 // pred_region
          %s209 = smul.u32 32, %s25
          %p210 = scmp.lt.s32.totalorder %s209, 31
          %s211 = scalar_select %p210, %s209, 31
          %s212 = smul.addr %s211, 4
          %s213 = scalar_lea.vmem %s1, %s212
          %s214 = smul.u32 32, %s25
        $region16: #{tpu_custom_call.1} parent=11 // pred_fallthru
          _
        // Predicated region
        $region17: #{tpu_custom_call.1} parent=11 // pred_check
          %p215 = pneg %p102
        $region18: #{tpu_custom_call.1} parent=11 // pred_check_branch
          %217 = sbr.rel (%p215) target = $region20
        $region19: #{tpu_custom_call.1} parent=11 // pred_region
          _
        $region20: #{tpu_custom_call.1} parent=11 // pred_fallthru
          _
        // Predicated region
        $region21: #{tpu_custom_call.1} parent=11 // pred_check
          %p218 = pneg %p123
        $region22: #{tpu_custom_call.1} parent=11 // pred_check_branch
          %220 = sbr.rel (%p218) target = $region24
        $region23: #{tpu_custom_call.1} parent=11 // pred_region
          _
        $region24: #{tpu_custom_call.1} parent=11 // pred_fallthru
          _
        // Predicated region
        $region25: #{tpu_custom_call.1} parent=11 // pred_check
          %p221 = pneg %p144
        $region26: #{tpu_custom_call.1} parent=11 // pred_check_branch
          %223 = sbr.rel (%p221) target = $region28
        $region27: #{tpu_custom_call.1} parent=11 // pred_region
          _
        $region28: #{tpu_custom_call.1} parent=11 // pred_fallthru
          _
        // Predicated region
        $region29: #{tpu_custom_call.1} parent=11 // pred_check
          %p224 = pneg %p165
        $region30: #{tpu_custom_call.1} parent=11 // pred_check_branch
          %226 = sbr.rel (%p224) target = $region32
        $region31: #{tpu_custom_call.1} parent=11 // pred_region
          _
        $region32: #{tpu_custom_call.1} parent=11 // pred_fallthru
          _
      $region12: #{tpu_custom_call.1} parent=5 // pred_fallthru
        _
      %p227 = scmp.lt.s32.totalorder %s15, 2
      // Predicated region
      $region33: #{tpu_custom_call.1} parent=5 // pred_check
        %p228 = pneg %p227
      $region34: #{tpu_custom_call.1} parent=5 // pred_check_branch
        %230 = sbr.rel (%p228) target = $region36
      $region35: #{tpu_custom_call.1} parent=5 // pred_region
        // Predicated region
        $region37: #{tpu_custom_call.1} parent=35 // pred_check
          %p231 = pneg %p49
        $region38: #{tpu_custom_call.1} parent=35 // pred_check_branch
          %233 = sbr.rel (%p231) target = $region40
        $region39: #{tpu_custom_call.1} parent=35 // pred_region
          %s234 = smul.u32 2, %s23
          %p235 = scmp.lt.s32.totalorder %s22, 1
          %s236 = scalar_select %p235, %s22, 1
          %p237 = scmp.lt.s32.totalorder %s234, 1
          %s238 = scalar_select %p237, %s234, 1
          %s239 = smul.addr %s236, 4
          %s240 = sadd.s32 %s238, %s239
          %s241 = smul.addr %s240, 4
          %s242 = scalar_lea.vmem %s0, %s241
          %s243 = smul.u32 2, %s23
        $region40: #{tpu_custom_call.1} parent=35 // pred_fallthru
          _
      $region36: #{tpu_custom_call.1} parent=5 // pred_fallthru
        _
      %p244 = scmp.le.s32.totalorder 1, %s15
      %p245 = scmp.lt.s32.totalorder %s15, 3
      %p246 = pnand %p244, %p245
      %p247 = pneg %p246
      // Predicated region
      $region41: #{tpu_custom_call.1} parent=5 // pred_check
        _
      $region42: #{tpu_custom_call.1} parent=5 // pred_check_branch
        %249 = sbr.rel (%p246) target = $region44
      $region43: #{tpu_custom_call.1} parent=5 // pred_region
        %s250 = ssub.s32 %s15, 1
        %s251 = smul.u32 2, %s25
        %p252 = scmp.lt.s32.totalorder %s24, 1
        %s253 = scalar_select %p252, %s24, 1
        %p254 = scmp.lt.s32.totalorder %s251, 1
        %s255 = scalar_select %p254, %s251, 1
        %s256 = smul.addr %s253, 4
        %s257 = sadd.s32 %s255, %s256
        %s258 = smul.addr %s257, 4
        %s259 = scalar_lea.vmem %s0, %s258
        %p260 = pneg %p55
        %p261 = pneg %p52
        %s262 = smul.u32 32, %s25
        %p263 = scmp.lt.s32.totalorder %s262, 31
        %s264 = scalar_select %p263, %s262, 31
        %s265 = smul.addr %s264, 4
        %s266 = scalar_lea.vmem %s1, %s265
        %p267 = pneg %p81
        %p268 = pneg %p78
        %p269 = pneg %p102
        %p270 = pneg %p99
        %p271 = pneg %p123
        %p272 = pneg %p120
        %p273 = pneg %p144
        %p274 = pneg %p141
        %p275 = pneg %p165
        %p276 = pneg %p162
        %p277 = pneg %p191
        %p278 = pneg %p188
        %s279 = sand.u32 %s178, 1
        %s280 = scalar_lea.sflag [#allocation4], %s279
        %s281 = sand.u32 %s178, 1
        %s282 = smul.addr %s281, 16
        %s283 = scalar_lea.vmem [#allocation3], %s282
        %s284 = smul.u32 2, %s25
        %p285 = scmp.lt.s32.totalorder %s24, 1
        %s286 = scalar_select %p285, %s24, 1
        %p287 = scmp.lt.s32.totalorder %s284, 1
        %s288 = scalar_select %p287, %s284, 1
        %s289 = smul.addr %s286, 4
        %s290 = sadd.s32 %s288, %s289
        %s291 = smul.addr %s290, 4
        %s292 = scalar_lea.vmem %s0, %s291
        %s293 = smul.u32 2, %s25
        %s294 = smul.u32 32, %s25
        %p295 = scmp.lt.s32.totalorder %s294, 31
        %s296 = scalar_select %p295, %s294, 31
        %s297 = smul.addr %s296, 4
        %s298 = scalar_lea.vmem %s1, %s297
        %s299 = smul.u32 32, %s25
        %p301 = scmp.eq.s32.totalorder %s25, 0
        // Predicated region
        $region45: #{tpu_custom_call.1} parent=43 // pred_check
          %p302 = pneg %p301
        $region46: #{tpu_custom_call.1} parent=43 // pred_check_branch
          %304 = sbr.rel (%p302) target = $region48
        $region47: #{tpu_custom_call.1} parent=43 // pred_region
          %vm305 = vcmask 523264
          %306 = vst.msk [vmem:[#allocation2] sm:$0xff] %vm305, 0.0
          %307 = vst.msk [vmem:[#allocation2 + $0x8] sm:$0xff] %vm305, 0.0
        $region48: #{tpu_custom_call.1} parent=43 // pred_fallthru
          _
        %v308 = vld [vmem:[#allocation2] sm:$0xff]
        %v309 = vld [vmem:[#allocation2 + $0x8] sm:$0xff]
        %v310 = vld [vmem:[%s292] sm:$0xff]
        %v311 = vld [vmem:[%s292 + $0x8] sm:$0xff]
        %v312 = vld [vmem:[%s298] sm:$0xf]
        %v313 = vld [vmem:[%s298 + $0x4] sm:$0xf]
        %v314 = vld [vmem:[%s298 + $0x8] sm:$0xf]
        %v315 = vld [vmem:[%s298 + $0xc] sm:$0xf]
        %v316 = vld [vmem:[%s298 + $0x10] sm:$0xf]
        %v317 = vld [vmem:[%s298 + $0x14] sm:$0xf]
        %v318 = vld [vmem:[%s298 + $0x18] sm:$0xf]
        %v319 = vld [vmem:[%s298 + $0x1c] sm:$0xf]
        %v320 = vld [vmem:[%s298 + $0x20] sm:$0xf]
        %v321 = vld [vmem:[%s298 + $0x24] sm:$0xf]
        %v322 = vld [vmem:[%s298 + $0x28] sm:$0xf]
        %v323 = vld [vmem:[%s298 + $0x2c] sm:$0xf]
        %v324 = vld [vmem:[%s298 + $0x30] sm:$0xf]
        %v325 = vld [vmem:[%s298 + $0x34] sm:$0xf]
        %v326 = vld [vmem:[%s298 + $0x38] sm:$0xf]
        %v327 = vld [vmem:[%s298 + $0x3c] sm:$0xf]
        %v328 = vld [vmem:[%s298 + $0x40] sm:$0xf]
        %v329 = vld [vmem:[%s298 + $0x44] sm:$0xf]
        %v330 = vld [vmem:[%s298 + $0x48] sm:$0xf]
        %v331 = vld [vmem:[%s298 + $0x4c] sm:$0xf]
        %v332 = vld [vmem:[%s298 + $0x50] sm:$0xf]
        %v333 = vld [vmem:[%s298 + $0x54] sm:$0xf]
        %v334 = vld [vmem:[%s298 + $0x58] sm:$0xf]
        %v335 = vld [vmem:[%s298 + $0x5c] sm:$0xf]
        %v336 = vld [vmem:[%s298 + $0x60] sm:$0xf]
        %v337 = vld [vmem:[%s298 + $0x64] sm:$0xf]
        %v338 = vld [vmem:[%s298 + $0x68] sm:$0xf]
        %v339 = vld [vmem:[%s298 + $0x6c] sm:$0xf]
        %v340 = vld [vmem:[%s298 + $0x70] sm:$0xf]
        %v341 = vld [vmem:[%s298 + $0x74] sm:$0xf]
        %v342 = vld [vmem:[%s298 + $0x78] sm:$0xf]
        %v343 = vld [vmem:[%s298 + $0x7c] sm:$0xf]
        %v346 = vunpack.c.l.b16 %v310
        %v347 = vunpack.c.h.b16 %v310
        %v348 = vunpack.c.l.b16 %v311
        %v349 = vunpack.c.h.b16 %v311
        %v350 = vpack.c.b16 %v348, %v346
        %v351 = vpack.c.b16 %v349, %v347
        %v386 = vunpack.c.l.b16 %v312
        %v387 = vunpack.c.l.b16 %v313
        %v388 = vunpack.c.l.b16 %v314
        %v389 = vunpack.c.l.b16 %v315
        %v390 = vunpack.c.l.b16 %v316
        %v391 = vunpack.c.l.b16 %v317
        %v392 = vunpack.c.l.b16 %v318
        %v393 = vunpack.c.l.b16 %v319
        %v394 = vunpack.c.l.b16 %v320
        %v395 = vunpack.c.l.b16 %v321
        %v396 = vunpack.c.l.b16 %v322
        %v397 = vunpack.c.l.b16 %v323
        %v398 = vunpack.c.l.b16 %v324
        %v399 = vunpack.c.l.b16 %v325
        %v400 = vunpack.c.l.b16 %v326
        %v401 = vunpack.c.l.b16 %v327
        %v402 = vunpack.c.l.b16 %v328
        %v403 = vunpack.c.l.b16 %v329
        %v404 = vunpack.c.l.b16 %v330
        %v405 = vunpack.c.l.b16 %v331
        %v406 = vunpack.c.l.b16 %v332
        %v407 = vunpack.c.l.b16 %v333
        %v408 = vunpack.c.l.b16 %v334
        %v409 = vunpack.c.l.b16 %v335
        %v410 = vunpack.c.l.b16 %v336
        %v411 = vunpack.c.l.b16 %v337
        %v412 = vunpack.c.l.b16 %v338
        %v413 = vunpack.c.l.b16 %v339
        %v414 = vunpack.c.l.b16 %v340
        %v415 = vunpack.c.l.b16 %v341
        %v416 = vunpack.c.l.b16 %v342
        %v417 = vunpack.c.l.b16 %v343
        %v418 = vpack.c.b16 %v387, %v386
        %v419 = vpack.c.b16 %v389, %v388
        %v420 = vpack.c.b16 %v391, %v390
        %v421 = vpack.c.b16 %v393, %v392
        %v422 = vpack.c.b16 %v395, %v394
        %v423 = vpack.c.b16 %v397, %v396
        %v424 = vpack.c.b16 %v399, %v398
        %v425 = vpack.c.b16 %v401, %v400
        %v426 = vpack.c.b16 %v403, %v402
        %v427 = vpack.c.b16 %v405, %v404
        %v428 = vpack.c.b16 %v407, %v406
        %v429 = vpack.c.b16 %v409, %v408
        %v430 = vpack.c.b16 %v411, %v410
        %v431 = vpack.c.b16 %v413, %v412
        %v432 = vpack.c.b16 %v415, %v414
        %v433 = vpack.c.b16 %v417, %v416
        %450 = vmatpush.bf16.msra.mxu0 %v425
        %451 = vmatpush.bf16.msra.mxu0 %v424
        %452 = vmatpush.bf16.msra.mxu0 %v423
        %453 = vmatpush.bf16.msra.mxu0 %v422
        %454 = vmatpush.bf16.msra.mxu0 %v421
        %455 = vmatpush.bf16.msra.mxu0 %v420
        %456 = vmatpush.bf16.msra.mxu0 %v419
        %457 = vmatpush.bf16.msra.mxu0 %v418
        %458 = vmatmul.bf16.gmra.mxu0 %v350
        %v459 = vpop.f32.mrf.mxu0
        %v460 = vadd.f32 0.0, %v459
        %v461 = vpop.f32.mrf.mxu0
        %v462 = vadd.f32 0.0, %v461
        %463 = vdwg.mxu0
        %464 = vmatpush.bf16.msra.mxu0 %v433
        %465 = vmatpush.bf16.msra.mxu0 %v432
        %466 = vmatpush.bf16.msra.mxu0 %v431
        %467 = vmatpush.bf16.msra.mxu0 %v430
        %468 = vmatpush.bf16.msra.mxu0 %v429
        %469 = vmatpush.bf16.msra.mxu0 %v428
        %470 = vmatpush.bf16.msra.mxu0 %v427
        %471 = vmatpush.bf16.msra.mxu0 %v426
        %472 = vmatmul.bf16.gmra.mxu0 %v351
        %v473 = vpop.f32.mrf.mxu0
        %v474 = vadd.f32 %v460, %v473
        %v475 = vpop.f32.mrf.mxu0
        %v476 = vadd.f32 %v462, %v475
        %477 = vdwg.mxu0
        %v478 = vadd.f32 %v308, %v474
        %v479 = vadd.f32 %v309, %v476
        %vm480 = vcmask 523264
        %481 = vst.msk [vmem:[#allocation2] sm:$0xff] %vm480, %v478
        %482 = vst.msk [vmem:[#allocation2 + $0x8] sm:$0xff] %vm480, %v479
        // Predicated region
        $region49: #{tpu_custom_call.1} parent=43 // pred_check
          %p483 = pneg %p301
        $region50: #{tpu_custom_call.1} parent=43 // pred_check_branch
          %485 = sbr.rel (%p483) target = $region52
        $region51: #{tpu_custom_call.1} parent=43 // pred_region
          %v486 = vld [vmem:[%s2] sm:$0xf]
          %v487 = vld [vmem:[%s2 + $0x4] sm:$0xf]
          %v488 = vld [vmem:[#allocation2] sm:$0xff]
          %v489 = vld [vmem:[#allocation2 + $0x8] sm:$0xff]
          %v490 = vpack.c.bf16 %v489, %v488
          %v491 = vld [vmem:[%s3] sm:$0xff]
          %v492 = vld [vmem:[%s3 + $0x8] sm:$0xff]
          %494 = vset.pattern.permute.xlu0 0
          %495 = vperm.xlu0 %494, %v491
          %v496 = vpop.permute.xlu0 %495
          %499 = vset.pattern.permute.xlu0 0
          %500 = vperm.xlu0 %499, %v492
          %v501 = vpop.permute.xlu0 %500
          %v505 = vunpack.c.l.b16 %v486
          %v506 = vunpack.c.l.b16 %v487
          %v507 = vpack.c.b16 %v506, %v505
          %vm508 = vcmask 130048
          %v510 = vsel %vm508, %v507, 0
          %512 = vmatpush.bf16.msra.mxu0 0
          %513 = vmatpush.bf16.msra.mxu0 0
          %514 = vmatpush.bf16.msra.mxu0 0
          %515 = vmatpush.bf16.msra.mxu0 0
          %516 = vmatpush.bf16.msra.mxu0 0
          %517 = vmatpush.bf16.msra.mxu0 0
          %518 = vmatpush.bf16.msra.mxu0 0
          %519 = vmatpush.bf16.msra.mxu0 %v490
          %520 = vmatmul.bf16.gmra.mxu0 %v510
          %v521 = vpop.f32.mrf.mxu0
          %v522 = vadd.f32 %v496, %v521
          %v523 = vpop.f32.mrf.mxu0
          %v524 = vadd.f32 %v501, %v523
          %525 = vdwg.mxu0
          %v526 = vmax.f32 %v522, 0.0
          %v527 = vmax.f32 %v524, 0.0
          %v528 = vld [vmem:[%s4] sm:$0xff]
          %v529 = vld [vmem:[%s4 + $0x8] sm:$0xff]
          %v530 = vmul.f32 %v526, %v528
          %v531 = vmul.f32 %v527, %v529
          %v532 = vld [vmem:[%s5] sm:$0xf]
          %v533 = vld [vmem:[%s5 + $0x4] sm:$0xf]
          %v534 = vld [vmem:[%s5 + $0x8] sm:$0xf]
          %v535 = vld [vmem:[%s5 + $0xc] sm:$0xf]
          %v536 = vpack.c.bf16 %v531, %v530
          %v541 = vunpack.c.l.b16 %v532
          %v542 = vunpack.c.l.b16 %v533
          %v543 = vunpack.c.l.b16 %v534
          %v544 = vunpack.c.l.b16 %v535
          %v545 = vpack.c.b16 %v542, %v541
          %v546 = vpack.c.b16 %v544, %v543
          %v548 = vsel %vm508, %v545, 0
          %v551 = vsel %vm508, %v546, 0
          %553 = vmatpush.bf16.msra.mxu0 0
          %554 = vmatpush.bf16.msra.mxu0 0
          %555 = vmatpush.bf16.msra.mxu0 0
          %556 = vmatpush.bf16.msra.mxu0 0
          %557 = vmatpush.bf16.msra.mxu0 0
          %558 = vmatpush.bf16.msra.mxu0 0
          %559 = vmatpush.bf16.msra.mxu0 0
          %560 = vmatpush.bf16.msra.mxu0 %v536
          %561 = vmatmul.bf16.gmra.mxu0 %v548
          %v562 = vpop.f32.mrf.mxu0
          %v563 = vadd.f32 0.0, %v562
          %v564 = vpop.f32.mrf.mxu0
          %v565 = vadd.f32 0.0, %v564
          %566 = vmatmul.bf16.gmra.mxu0 %v551
          %v567 = vpop.f32.mrf.mxu0
          %v568 = vadd.f32 0.0, %v567
          %v569 = vpop.f32.mrf.mxu0
          %v570 = vadd.f32 0.0, %v569
          %571 = vdwg.mxu0
          %v572 = vpack.c.bf16 %v563, %v563
          %v573 = vpack.c.bf16 %v565, %v565
          %v574 = vpack.c.bf16 %v568, %v568
          %v575 = vpack.c.bf16 %v570, %v570
          %vm576 = vcmask 519168
          %577 = vst.msk [vmem:[%s283] sm:$0xf] %vm576, %v572
          %578 = vst.msk [vmem:[%s283 + $0x4] sm:$0xf] %vm576, %v573
          %579 = vst.msk [vmem:[%s283 + $0x8] sm:$0xf] %vm576, %v574
          %580 = vst.msk [vmem:[%s283 + $0xc] sm:$0xf] %vm576, %v575
        $region52: #{tpu_custom_call.1} parent=43 // pred_fallthru
          _
        %s581 = sand.u32 %s178, 1
        %s582 = scalar_lea.sflag [#allocation4], %s581
        %s583 = sand.u32 %s178, 1
        %s584 = smul.addr %s583, 16
        %s585 = scalar_lea.vmem [#allocation3], %s584
        // Predicated region
        $region53: #{tpu_custom_call.1} parent=43 // pred_check
          %p586 = pneg %p188
        $region54: #{tpu_custom_call.1} parent=43 // pred_check_branch
          %588 = sbr.rel (%p586) target = $region56
        $region55: #{tpu_custom_call.1} parent=43 // pred_region
          %590 = vsyncadd %s582, 0
          %s591 = smul.addr %s24, 4
          %s592 = smul.addr %s591, 4
          %s593 = scalar_lea.hbm %s6, %s592
          %s594 = sshll.u32 %s585, 4
          %s595 = int_to_ptr.vmem [resolvable:$true] %s594
          %s596 = sshll.u32 %s593, 4
          %s597 = int_to_ptr.hbm [resolvable:$true] %s596
          %602 = dma.vmem_to_hbm [thread:$0]  %s595, 256, %s597, %s582, 64, 64, 4
        $region56: #{tpu_custom_call.1} parent=43 // pred_fallthru
          _
      $region44: #{tpu_custom_call.1} parent=5 // pred_fallthru
        _
      %p603 = scmp.le.s32.totalorder 2, %s15
      // Predicated region
      $region57: #{tpu_custom_call.1} parent=5 // pred_check
        %p604 = pneg %p603
      $region58: #{tpu_custom_call.1} parent=5 // pred_check_branch
        %606 = sbr.rel (%p604) target = $region60
      $region59: #{tpu_custom_call.1} parent=5 // pred_region
        %s607 = ssub.s32 %s15, 2
        // Predicated region
        $region61: #{tpu_custom_call.1} parent=59 // pred_check
          %p608 = pneg %p194
        $region62: #{tpu_custom_call.1} parent=59 // pred_check_branch
          %610 = sbr.rel (%p608) target = $region64
        $region63: #{tpu_custom_call.1} parent=59 // pred_region
          %s611 = sand.u32 %s179, 1
          %s612 = scalar_lea.sflag [#allocation4], %s611
          %s613 = sand.u32 %s179, 1
          %s614 = smul.addr %s613, 16
          %s615 = scalar_lea.vmem [#allocation3], %s614
          %617 = dma.done %s612, 256
        $region64: #{tpu_custom_call.1} parent=59 // pred_fallthru
          _
      $region60: #{tpu_custom_call.1} parent=5 // pred_fallthru
        _
    $region6: #{tpu_custom_call.1} parent=1 // loop_footer
      %s19 = sadd.s32 1, %s15
    $region7: #{tpu_custom_call.1} parent=1 // loop_footer_branch
      %14 = sbr.rel target = $region3
    $region8: #{tpu_custom_call.1} parent=1 // loop_exit
      _
    %618 = vsyncpa [#allocation4], 1
    %s619 = scalar_lea.sflag [#allocation4], 1
    %620 = vsyncpa %s619, 1

</llo_original>
